<compile_context>
chip_gen: v7x
topology: tpu7x:2x2x1
jax: 0.10.0
libtpu: 0.0.40
codegen_flags: <defaults>
</compile_context>

<pallas_src>
import functools

import jax
import jax.numpy as jnp
from jax.experimental import pallas as pl
from jax.experimental.pallas import tpu as pltpu


# --------------------------------------------------------------------------------------
# Kernels
# --------------------------------------------------------------------------------------
def _bert_output_kernel(h_ref, w_ref, b_ref, res_ref, gamma_ref, beta_ref, o_ref,
                        *, eps, mm_dtype):
    """Whole-weight-resident path: dense + bias + residual + LayerNorm for one row tile."""
    # Dense: [rt, I] @ [I, H] on the MXU with f32 accumulation (cast to mm_dtype in VMEM).
    x = jnp.dot(h_ref[...].astype(mm_dtype), w_ref[...],
                preferred_element_type=jnp.float32)
    # TODO(synk): dropout is identity in eval mode; training-mode dropout (pltpu.prng_* mask) not emitted.
    x = x + b_ref[...].astype(jnp.float32) + res_ref[...].astype(jnp.float32)

    # LayerNorm over the hidden (lane) axis. var = E[x^2] - mean^2: the two lane reductions
    # are independent and pipeline in the XLU slot.
    mean = jnp.mean(x, axis=-1, keepdims=True)
    mean_sq = jnp.mean(x * x, axis=-1, keepdims=True)
    var = jnp.maximum(mean_sq - mean * mean, 0.0)
    xhat = (x - mean) * jax.lax.rsqrt(var + eps)
    o_ref[...] = (xhat * gamma_ref[...].astype(jnp.float32)
                  + beta_ref[...].astype(jnp.float32)).astype(o_ref.dtype)


def _bert_output_kernel_ktiled(h_ref, w_ref, b_ref, res_ref, gamma_ref, beta_ref, o_ref,
                               acc_ref, *, eps, mm_dtype):
    """K-tiled path: intermediate dim on an 'arbitrary' grid axis, f32 VMEM accumulator."""
    k = pl.program_id(1)

    @pl.when(k == 0)
    def _():
        acc_ref[...] = jnp.zeros_like(acc_ref)

    acc_ref[...] += jnp.dot(h_ref[...].astype(mm_dtype), w_ref[...],
                            preferred_element_type=jnp.float32)

    @pl.when(k == pl.num_programs(1) - 1)
    def _():
        # TODO(synk): dropout is identity in eval mode; training-mode dropout not emitted.
        x = acc_ref[...] + b_ref[...].astype(jnp.float32) + res_ref[...].astype(jnp.float32)
        mean = jnp.mean(x, axis=-1, keepdims=True)
        mean_sq = jnp.mean(x * x, axis=-1, keepdims=True)
        var = jnp.maximum(mean_sq - mean * mean, 0.0)
        xhat = (x - mean) * jax.lax.rsqrt(var + eps)
        o_ref[...] = (xhat * gamma_ref[...].astype(jnp.float32)
                      + beta_ref[...].astype(jnp.float32)).astype(o_ref.dtype)


# --------------------------------------------------------------------------------------
# Sizing helpers
# --------------------------------------------------------------------------------------
@functools.lru_cache(maxsize=None)
def _single_buffer_supported() -> bool:
    """One-time cached capability probe: can grid-invariant BlockSpecs be single-buffered?"""
    if not hasattr(pl, "Buffered"):
        return False

    def _probe(x_ref, o_ref):
        o_ref[...] = x_ref[...] + 1.0

    try:
        out = pl.pallas_call(
            _probe,
            out_shape=jax.ShapeDtypeStruct((8, 128), jnp.float32),
            grid=(2,),
            in_specs=[pl.BlockSpec((8, 128), lambda i: (0, 0),
                                   pipeline_mode=pl.Buffered(1))],
            out_specs=pl.BlockSpec((8, 128), lambda i: (0, 0)),
        )(jnp.zeros((8, 128), jnp.float32))
        jax.block_until_ready(out)
        return True
    except Exception:  # narrow, one-time probe; real kernel builds never hide behind this.
        return False


def _vmem_capacity_bytes(default_bytes=64 * 1024 * 1024):
    try:
        return int(pltpu.get_tpu_info().vmem_capacity_bytes)
    except Exception:  # hardware query fallback only
        return default_bytes


def _sublane_multiple(dtype):
    # f32 -> 8, bf16 -> 16, int8/fp8 -> 32 (second-minor packing).
    return 8 * 4 // jnp.dtype(dtype).itemsize


def _round_row_tile(v, rows, min_rt):
    v = max(min_rt, min(int(v), rows))
    for m in (256, 128):  # 256x256 MXU on v6e/v7x; 128 works everywhere
        if v >= m:
            return (v // m) * m
    return (v // min_rt) * min_rt


def _choose_row_tile(rows, requested, min_rt):
    rt = _round_row_tile(requested, rows, min_rt)
    # Prefer an even number (>= 2) of row-grid steps so both v7x TensorCores get balanced work.
    if rows >= 2 * min_rt:
        cand = rt
        while True:
            steps = -(-rows // cand)
            if steps >= 2 and steps % 2 == 0:
                rt = cand
                break
            nxt = _round_row_tile(cand // 2, rows, min_rt)
            if nxt >= cand:
                break
            cand = nxt
    return max(rt, min_rt)


def _default_k_tile(I, target=512):
    # Largest multiple of 128 that divides I exactly and is <= target (ragged K tiles would
    # feed garbage into the accumulator, so an exact divisor is required).
    best = None
    kt = 128
    while kt <= min(I, target):
        if I % kt == 0:
            best = kt
        kt += 128
    return best


def _simple_path_vmem(rt, I, H, h_sz, r_sz, o_sz, w_bytes, single_buf):
    bufs = 1 if single_buf else 2
    return (w_bytes * bufs
            + 2 * rt * I * h_sz        # streamed activation tiles (double-buffered)
            + 2 * rt * H * r_sz        # streamed residual tiles
            + 2 * rt * H * o_sz        # output tiles
            + bufs * 3 * H * 4         # bias / gamma / beta
            + (2 << 20))               # Mosaic internal scratch headroom


def _ktiled_vmem(rt, kt, H, h_sz, r_sz, o_sz, w_sz, single_buf):
    bufs = 1 if single_buf else 2
    return (2 * kt * H * w_sz          # streamed weight K-blocks
            + 2 * rt * kt * h_sz
            + 2 * rt * H * r_sz
            + 2 * rt * H * o_sz
            + rt * H * 4               # f32 accumulator scratch
            + bufs * 3 * H * 4
            + (2 << 20))


# --------------------------------------------------------------------------------------
# Wrapper
# --------------------------------------------------------------------------------------
def bert_output(hidden_states, input_tensor, weight, bias, gamma, beta,
                *, eps=1e-6, row_tile=512, k_tile=None, matmul_dtype=None,
                vmem_budget_bytes=None):
    """hidden_states: [B, S, I], input_tensor: [B, S, H], weight: [I, H] (PyTorch W.T) -> [B, S, H]."""
    B, S, I = hidden_states.shape
    H = input_tensor.shape[-1]
    rows = B * S
    out_dtype = input_tensor.dtype

    mm_dtype = (jnp.dtype(matmul_dtype) if matmul_dtype is not None
                else jnp.dtype(hidden_states.dtype))

    # Stream activations / residual in their native dtype (cast in-kernel); one-time small
    # weight cast only if the caller asked for a different matmul dtype.
    h2d = hidden_states.reshape(rows, I)
    r2d = input_tensor.reshape(rows, H)
    w = weight if weight.dtype == mm_dtype else weight.astype(mm_dtype)
    b2d = bias.reshape(1, H)
    g2d = gamma.reshape(1, H)
    be2d = beta.reshape(1, H)

    h_sz = jnp.dtype(h2d.dtype).itemsize
    r_sz = jnp.dtype(r2d.dtype).itemsize
    o_sz = jnp.dtype(out_dtype).itemsize
    w_sz = jnp.dtype(mm_dtype).itemsize
    w_bytes = I * H * w_sz

    min_rt = max(_sublane_multiple(h2d.dtype), _sublane_multiple(r2d.dtype),
                 _sublane_multiple(out_dtype))

    if vmem_budget_bytes is None:
        # ~96 MiB on 128 MiB parts (v5e/v6e), ~48 MiB on v7x's 64 MiB per-core VMEM.
        vmem_budget_bytes = (_vmem_capacity_bytes() * 3) // 4
    vmem_budget_bytes = int(vmem_budget_bytes)

    single_buf = _single_buffer_supported()

    rt = _choose_row_tile(rows, row_tile, min_rt)

    # Decide between the whole-weight-resident path and the K-tiled path.
    use_ktiled = k_tile is not None
    if not use_ktiled:
        probe_rt = min(rt, max(min_rt, 256))
        if _simple_path_vmem(probe_rt, I, H, h_sz, r_sz, o_sz, w_bytes, single_buf) > vmem_budget_bytes:
            kt_auto = _default_k_tile(I)
            if kt_auto is not None:
                use_ktiled = True
                k_tile = kt_auto

    if use_ktiled:
        kt = int(k_tile)
        assert I % kt == 0 and (kt % 128 == 0 or kt == I), "k_tile must divide I and be lane-aligned"
        while (_ktiled_vmem(rt, kt, H, h_sz, r_sz, o_sz, w_sz, single_buf) > vmem_budget_bytes
               and rt > min_rt):
            rt = max(min_rt, _round_row_tile(rt // 2, rows, min_rt))
    else:
        while (_simple_path_vmem(rt, I, H, h_sz, r_sz, o_sz, w_bytes, single_buf) > vmem_budget_bytes
               and rt > min_rt):
            rt = max(min_rt, _round_row_tile(rt // 2, rows, min_rt))

    row_steps = pl.cdiv(rows, rt)

    def _const_spec(shape, index_map):
        if single_buf:
            return pl.BlockSpec(shape, index_map, pipeline_mode=pl.Buffered(1))
        return pl.BlockSpec(shape, index_map)

    cost = pl.CostEstimate(
        flops=2 * rows * I * H,
        transcendentals=0,
        bytes_accessed=int(rows * I * h_sz + rows * H * r_sz + rows * H * o_sz
                           + I * H * w_sz + 3 * H * 4),
    )

    if not use_ktiled:
        kernel = functools.partial(_bert_output_kernel, eps=float(eps), mm_dtype=mm_dtype)
        out2d = pl.pallas_call(
            kernel,
            out_shape=jax.ShapeDtypeStruct((rows, H), out_dtype),
            grid_spec=pltpu.PrefetchScalarGridSpec(
                num_scalar_prefetch=0,
                grid=(row_steps,),
                in_specs=[
                    pl.BlockSpec((rt, I), lambda i: (i, 0)),     # activation tile (streamed)
                    _const_spec((I, H), lambda i: (0, 0)),       # dense weight (resident)
                    _const_spec((1, H), lambda i: (0, 0)),       # dense bias
                    pl.BlockSpec((rt, H), lambda i: (i, 0)),     # residual tile (streamed)
                    _const_spec((1, H), lambda i: (0, 0)),       # LayerNorm gamma
                    _const_spec((1, H), lambda i: (0, 0)),       # LayerNorm beta
                ],
                out_specs=pl.BlockSpec((rt, H), lambda i: (i, 0)),
            ),
            compiler_params=pltpu.CompilerParams(
                dimension_semantics=("parallel",),
                vmem_limit_bytes=vmem_budget_bytes),
            cost_estimate=cost,
        )(h2d, w, b2d, r2d, g2d, be2d)
    else:
        kt = int(k_tile)
        kernel = functools.partial(_bert_output_kernel_ktiled, eps=float(eps), mm_dtype=mm_dtype)
        out2d = pl.pallas_call(
            kernel,
            out_shape=jax.ShapeDtypeStruct((rows, H), out_dtype),
            grid_spec=pltpu.PrefetchScalarGridSpec(
                num_scalar_prefetch=0,
                grid=(row_steps, I // kt),
                in_specs=[
                    pl.BlockSpec((rt, kt), lambda i, k: (i, k)),   # activation K-block
                    pl.BlockSpec((kt, H), lambda i, k: (k, 0)),    # weight K-block (streamed)
                    _const_spec((1, H), lambda i, k: (0, 0)),      # bias
                    pl.BlockSpec((rt, H), lambda i, k: (i, 0)),    # residual tile
                    _const_spec((1, H), lambda i, k: (0, 0)),      # gamma
                    _const_spec((1, H), lambda i, k: (0, 0)),      # beta
                ],
                out_specs=pl.BlockSpec((rt, H), lambda i, k: (i, 0)),
                scratch_shapes=[pltpu.VMEM((rt, H), jnp.float32)],
            ),
            compiler_params=pltpu.CompilerParams(
                dimension_semantics=("parallel", "arbitrary"),
                vmem_limit_bytes=vmem_budget_bytes),
            cost_estimate=cost,
        )(h2d, w, b2d, r2d, g2d, be2d)

    return out2d.reshape(B, S, H)


# --------------------------------------------------------------------------------------
# Reference + self-test
# --------------------------------------------------------------------------------------
def reference(hidden_states, input_tensor, weight, bias, gamma, beta, eps=1e-6):
    x = jnp.einsum("bsi,ih->bsh", hidden_states, weight) + bias
    x = x + input_tensor
    mean = jnp.mean(x, axis=-1, keepdims=True)
    var = jnp.mean((x - mean) ** 2, axis=-1, keepdims=True)
    return (x - mean) * jax.lax.rsqrt(var + eps) * gamma + beta


if __name__ == "__main__":
    # Small but lane-aligned BERT-ish config: batch=2, seq=8, intermediate=256, hidden=128.
    B, S, I, H = 2, 8, 256, 128

    key = jax.random.PRNGKey(0)
    k1, k2, k3, k4, k5 = jax.random.split(key, 5)

    hidden_states = jax.random.normal(k1, (B, S, I), dtype=jnp.float32)
    input_tensor = jax.random.normal(k2, (B, S, H), dtype=jnp.float32)

    # Linear: W [I, H] (== PyTorch W.T), bias [H]; LayerNorm gamma/beta [H].
    weight = jax.random.normal(k3, (I, H), dtype=jnp.float32) * 0.02
    bias = jax.random.normal(k4, (H,), dtype=jnp.float32) * 0.02
    gamma = jnp.ones((H,), jnp.float32) + 0.01 * jax.random.normal(k5, (H,), jnp.float32)
    beta = jnp.zeros((H,), jnp.float32)

    ref = reference(hidden_states, input_tensor, weight, bias, gamma, beta)

    # Default path: f32 inputs -> f32 matmul (no implicit precision drop), whole weight resident.
    out = jax.block_until_ready(
        bert_output(hidden_states, input_tensor, weight, bias, gamma, beta))
    assert out.shape == (B, S, H)
    assert jnp.allclose(out, ref, atol=1e-4, rtol=1e-4), "f32 mismatch vs reference"

    # Explicit bf16 matmul fast path (f32 accumulation + f32 LayerNorm math): looser tolerance.
    out_bf16 = jax.block_until_ready(
        bert_output(hidden_states, input_tensor, weight, bias, gamma, beta,
                    matmul_dtype=jnp.bfloat16))
    assert jnp.allclose(out_bf16, ref, atol=3e-2, rtol=3e-2), "bf16 mismatch vs reference"

    # K-tiled path (intermediate-dim grid axis + f32 VMEM accumulator), forced via small k_tile.
    out_kt = jax.block_until_ready(
        bert_output(hidden_states, input_tensor, weight, bias, gamma, beta, k_tile=128))
    assert jnp.allclose(out_kt, ref, atol=1e-4, rtol=1e-4), "k-tiled mismatch vs reference"

    # Ragged row count (rows % row_tile != 0): relies on Pallas block masking, no wrapper padding.
    out_rag = jax.block_until_ready(
        bert_output(hidden_states[:, :5], input_tensor[:, :5], weight, bias, gamma, beta,
                    row_tile=8))
    ref_rag = reference(hidden_states[:, :5], input_tensor[:, :5], weight, bias, gamma, beta)
    assert jnp.allclose(out_rag, ref_rag, atol=1e-4, rtol=1e-4), "ragged-rows mismatch vs reference"

    print("KERNEL_OK")
</pallas_src>

<mosaic_0001>
module attributes {stable_mosaic.version = 11 : i64} {
  func.func @_probe(%arg0: i32, %arg1: memref<8x128xf32, #tpu.memory_space<vmem>>, %arg2: memref<8x128xf32, #tpu.memory_space<vmem>>) attributes {dimension_semantics = [#tpu.dimension_semantics<arbitrary>], iteration_bounds = array<i64: 2>, scalar_prefetch = 0 : i64, scratch_operands = 0 : i64, tpu.core_type = #tpu.core_type<tc>, window_params = [{pipeline_mode = #tpu.pipeline_mode<synchronous>, transform_indices = @transform_0, window_bounds = array<i64: 8, 128>}, {pipeline_mode = #tpu.pipeline_mode<synchronous>, transform_indices = @transform_1, window_bounds = array<i64: 8, 128>}]} {
    %c0 = arith.constant 0 : index
    %c0_0 = arith.constant 0 : index
    %0 = vector.load %arg1[%c0, %c0_0] : memref<8x128xf32, #tpu.memory_space<vmem>>, vector<8x128xf32>
    %cst = arith.constant 1.000000e+00 : f32
    %1 = vector.broadcast %cst : f32 to vector<8x128xf32>
    %2 = arith.addf %0, %1 : vector<8x128xf32>
    %c0_1 = arith.constant 0 : index
    %c0_2 = arith.constant 0 : index
    %3 = vector.load %arg2[%c0_1, %c0_2] : memref<8x128xf32, #tpu.memory_space<vmem>>, vector<8x128xf32>
    tpu.vector_store %arg2[%c0_1, %c0_2], %2 {strides = array<i32>} : memref<8x128xf32, #tpu.memory_space<vmem>>, vector<8x128xf32>,
    return
  }
  func.func @transform_0(%arg0: i32) -> (i32, i32) {
    %c0_i32 = arith.constant 0 : i32
    %c0_i32_0 = arith.constant 0 : i32
    %c0_i32_1 = arith.constant 0 : i32
    return %c0_i32, %c0_i32_0 : i32, i32
  }
  func.func @transform_1(%arg0: i32) -> (i32, i32) {
    %c0_i32 = arith.constant 0 : i32
    %c0_i32_0 = arith.constant 0 : i32
    %c0_i32_1 = arith.constant 0 : i32
    return %c0_i32, %c0_i32_0 : i32, i32
  }
}

module attributes {stable_mosaic.version = 11 : i64} {
  func.func @_bert_output_kernel(%arg0: i32, %arg1: memref<8x256xf32, #tpu.memory_space<vmem>>, %arg2: memref<256x128xf32, #tpu.memory_space<vmem>>, %arg3: memref<1x128xf32, #tpu.memory_space<vmem>>, %arg4: memref<8x128xf32, #tpu.memory_space<vmem>>, %arg5: memref<1x128xf32, #tpu.memory_space<vmem>>, %arg6: memref<1x128xf32, #tpu.memory_space<vmem>>, %arg7: memref<8x128xf32, #tpu.memory_space<vmem>>) attributes {dimension_semantics = [#tpu.dimension_semantics<parallel>], iteration_bounds = array<i64: 2>, scalar_prefetch = 0 : i64, scratch_operands = 0 : i64, tpu.core_type = #tpu.core_type<tc>, window_params = [{transform_indices = @transform_0, window_bounds = array<i64: 8, 256>}, {pipeline_mode = #tpu.pipeline_mode<synchronous>, transform_indices = @transform_1, window_bounds = array<i64: 256, 128>}, {pipeline_mode = #tpu.pipeline_mode<synchronous>, transform_indices = @transform_2, window_bounds = array<i64: 1, 128>}, {transform_indices = @transform_3, window_bounds = array<i64: 8, 128>}, {pipeline_mode = #tpu.pipeline_mode<synchronous>, transform_indices = @transform_4, window_bounds = array<i64: 1, 128>}, {pipeline_mode = #tpu.pipeline_mode<synchronous>, transform_indices = @transform_5, window_bounds = array<i64: 1, 128>}, {transform_indices = @transform_6, window_bounds = array<i64: 8, 128>}]} {
    %c0 = arith.constant 0 : index
    %c0_0 = arith.constant 0 : index
    %0 = vector.load %arg1[%c0, %c0_0] : memref<8x256xf32, #tpu.memory_space<vmem>>, vector<8x256xf32>
    %c0_1 = arith.constant 0 : index
    %c0_2 = arith.constant 0 : index
    %1 = vector.load %arg2[%c0_1, %c0_2] : memref<256x128xf32, #tpu.memory_space<vmem>>, vector<256x128xf32>
    %cst = arith.constant dense<0.000000e+00> : vector<8x128xf32>
    %2 = tpu.matmul %0, %1, %cst {dimension_numbers = #tpu.dot_dimension_numbers<[1], [0], [0], [1], [0, 0, 1, 1], [], []>} : vector<8x256xf32>, vector<256x128xf32>, vector<8x128xf32> -> vector<8x128xf32>
    %c0_3 = arith.constant 0 : index
    %c0_4 = arith.constant 0 : index
    %3 = vector.load %arg3[%c0_3, %c0_4] : memref<1x128xf32, #tpu.memory_space<vmem>>, vector<1x128xf32>
    %4 = vector.broadcast %3 : vector<1x128xf32> to vector<8x128xf32>
    %5 = arith.addf %2, %4 : vector<8x128xf32>
    %c0_5 = arith.constant 0 : index
    %c0_6 = arith.constant 0 : index
    %6 = vector.load %arg4[%c0_5, %c0_6] : memref<8x128xf32, #tpu.memory_space<vmem>>, vector<8x128xf32>
    %7 = arith.addf %5, %6 : vector<8x128xf32>
    %cst_7 = arith.constant dense<0.000000e+00> : vector<8xf32>
    %8 = vector.multi_reduction <add>, %7, %cst_7 [1] : vector<8x128xf32> to vector<8xf32>
    %9 = vector.shape_cast %8 : vector<8xf32> to vector<8x1xf32>
    %cst_8 = arith.constant 1.280000e+02 : f32
    %10 = vector.broadcast %cst_8 : f32 to vector<8x1xf32>
    %11 = arith.divf %9, %10 : vector<8x1xf32>
    %12 = arith.mulf %7, %7 : vector<8x128xf32>
    %cst_9 = arith.constant dense<0.000000e+00> : vector<8xf32>
    %13 = vector.multi_reduction <add>, %12, %cst_9 [1] : vector<8x128xf32> to vector<8xf32>
    %14 = vector.shape_cast %13 : vector<8xf32> to vector<8x1xf32>
    %cst_10 = arith.constant 1.280000e+02 : f32
    %15 = vector.broadcast %cst_10 : f32 to vector<8x1xf32>
    %16 = arith.divf %14, %15 : vector<8x1xf32>
    %17 = arith.mulf %11, %11 : vector<8x1xf32>
    %18 = arith.subf %16, %17 : vector<8x1xf32>
    %cst_11 = arith.constant 0.000000e+00 : f32
    %19 = vector.broadcast %cst_11 : f32 to vector<8x1xf32>
    %20 = arith.maximumf %18, %19 : vector<8x1xf32>
    %21 = vector.broadcast %11 : vector<8x1xf32> to vector<8x128xf32>
    %22 = arith.subf %7, %21 : vector<8x128xf32>
    %cst_12 = arith.constant 9.99999997E-7 : f32
    %23 = vector.broadcast %cst_12 : f32 to vector<8x1xf32>
    %24 = arith.addf %20, %23 : vector<8x1xf32>
    %25 = math.rsqrt %24 : vector<8x1xf32>
    %26 = vector.broadcast %25 : vector<8x1xf32> to vector<8x128xf32>
    %27 = arith.mulf %22, %26 : vector<8x128xf32>
    %c0_13 = arith.constant 0 : index
    %c0_14 = arith.constant 0 : index
    %28 = vector.load %arg5[%c0_13, %c0_14] : memref<1x128xf32, #tpu.memory_space<vmem>>, vector<1x128xf32>
    %29 = vector.broadcast %28 : vector<1x128xf32> to vector<8x128xf32>
    %30 = arith.mulf %27, %29 : vector<8x128xf32>
    %c0_15 = arith.constant 0 : index
    %c0_16 = arith.constant 0 : index
    %31 = vector.load %arg6[%c0_15, %c0_16] : memref<1x128xf32, #tpu.memory_space<vmem>>, vector<1x128xf32>
    %32 = vector.broadcast %31 : vector<1x128xf32> to vector<8x128xf32>
    %33 = arith.addf %30, %32 : vector<8x128xf32>
    %c0_17 = arith.constant 0 : index
    %c0_18 = arith.constant 0 : index
    %34 = vector.load %arg7[%c0_17, %c0_18] : memref<8x128xf32, #tpu.memory_space<vmem>>, vector<8x128xf32>
    tpu.vector_store %arg7[%c0_17, %c0_18], %33 {strides = array<i32>} : memref<8x128xf32, #tpu.memory_space<vmem>>, vector<8x128xf32>,
    return
  }
  func.func @transform_0(%arg0: i32) -> (i32, i32) {
    %c0_i32 = arith.constant 0 : i32
    %c0_i32_0 = arith.constant 0 : i32
    return %arg0, %c0_i32 : i32, i32
  }
  func.func @transform_1(%arg0: i32) -> (i32, i32) {
    %c0_i32 = arith.constant 0 : i32
    %c0_i32_0 = arith.constant 0 : i32
    %c0_i32_1 = arith.constant 0 : i32
    return %c0_i32, %c0_i32_0 : i32, i32
  }
  func.func @transform_2(%arg0: i32) -> (i32, i32) {
    %c0_i32 = arith.constant 0 : i32
    %c0_i32_0 = arith.constant 0 : i32
    %c0_i32_1 = arith.constant 0 : i32
    return %c0_i32, %c0_i32_0 : i32, i32
  }
  func.func @transform_3(%arg0: i32) -> (i32, i32) {
    %c0_i32 = arith.constant 0 : i32
    %c0_i32_0 = arith.constant 0 : i32
    return %arg0, %c0_i32 : i32, i32
  }
  func.func @transform_4(%arg0: i32) -> (i32, i32) {
    %c0_i32 = arith.constant 0 : i32
    %c0_i32_0 = arith.constant 0 : i32
    %c0_i32_1 = arith.constant 0 : i32
    return %c0_i32, %c0_i32_0 : i32, i32
  }
  func.func @transform_5(%arg0: i32) -> (i32, i32) {
    %c0_i32 = arith.constant 0 : i32
    %c0_i32_0 = arith.constant 0 : i32
    %c0_i32_1 = arith.constant 0 : i32
    return %c0_i32, %c0_i32_0 : i32, i32
  }
  func.func @transform_6(%arg0: i32) -> (i32, i32) {
    %c0_i32 = arith.constant 0 : i32
    %c0_i32_0 = arith.constant 0 : i32
    return %arg0, %c0_i32 : i32, i32
  }
}

</mosaic_0001>

<llo_original>
// kernel: tpu_custom_call.1
$region0: #{tpu_custom_call.1}
  #allocation0 [shape = 'u32[]', space=smem, size = 0x4, offset = 0x4, fixed_abs, tag = 'smem constant byte address 0x4 - core index']
  #allocation1 [shape = 'u32[144,128]{1,0:T(1,128)}', space=vmem, size = 0x12000, scoped, tag = 'internal scratch']
  %s0 = inlined_call_operand.hbm [shape: f32[8,128], index: 0, kind: input, shape index: {}]
  %s1 = inlined_call_operand.hbm [shape: f32[8,128], index: 1, kind: output, shape index: {}]
  %s2 = sld [smem:[#allocation0]]
  $region41: #{tpu_custom_call.1} parent=0
    _
  %s4 = ssub.s32 1, %s2
  %s5 = scalar_select 0, %s4, %s2
  $region1: #{tpu_custom_call.1} parent=0
    #allocation2 [shape = 'u8[4096]{0}', space=vmem, size = 0x1000, scoped, tag = 'input window, operand 0, single buffered']
    #allocation3 [shape = 's32[2]{0}', space=sflag, size = 0x8, scoped, tag = 'scoped memory for tpu_custom_call.1']
    #allocation4 [shape = 's32[2]{0}', space=sflag, size = 0x8, scoped, tag = 'scoped memory for tpu_custom_call.1']
    #allocation5 [shape = 'u8[4096]{0}', space=vmem, size = 0x1000, scoped, tag = 'output window, operand 0, single buffered']
    %6 = vsyncpa [#allocation3], 0
    %7 = vsyncpa [#allocation4], 0
    loop: start=0, step=1, limit=4
    $region2: #{tpu_custom_call.1} parent=1 // loop_pre_header
      _
    $region3: #{tpu_custom_call.1} parent=1 // loop_header
      %s9 = sphi 0, %s13
      %p10 = scmp.ge.s32.totalorder %s9, 4
      %s17 = sphi 0, %s17
      %s19 = sphi 0, %s17
      %s20 = sphi 0, %s19
      %s34 = sphi 0, %s20
      %s38 = sphi 0, %s38
      %s40 = sphi 0, %s38
      %s41 = sphi 0, %s40
      %s55 = sphi 0, %s41
    $region4: #{tpu_custom_call.1} parent=1 // loop_header_branch
      %12 = sbr.rel (%p10) target = $region8
    $region5: #{tpu_custom_call.1} parent=1 // loop_body
      %s14 = ssub.s32 %s9, 1
      %s15 = ssub.s32 %s9, 2
      %s16 = sadd.s32 %s9, 1
      %s18 = sadd.s32 %s17, 1
      %p21 = scmp.eq.s32.totalorder %s9, 1
      %p22 = scmp.ne.s32.totalorder %s17, %s19
      %p23 = scmp.eq.s32.totalorder %s9, 0
      %p24 = por %p22, %p23
      %p25 = scmp.ne.s32.totalorder %s17, %s19
      %p26 = scmp.eq.s32.totalorder %s14, 1
      %p27 = por %p25, %p26
      %p28 = scmp.ne.s32.totalorder %s19, %s20
      %p29 = scmp.eq.s32.totalorder %s14, 0
      %p30 = por %p28, %p29
      %p31 = scmp.ne.s32.totalorder %s19, %s20
      %p32 = scmp.eq.s32.totalorder %s15, 1
      %p33 = por %p31, %p32
      %p35 = scmp.ne.s32.totalorder %s20, %s34
      %p36 = scmp.eq.s32.totalorder %s15, 0
      %p37 = por %p35, %p36
      %s39 = sadd.s32 %s38, 1
      %p42 = scmp.eq.s32.totalorder %s9, 1
      %p43 = scmp.ne.s32.totalorder %s38, %s40
      %p44 = scmp.eq.s32.totalorder %s9, 0
      %p45 = por %p43, %p44
      %p46 = scmp.ne.s32.totalorder %s38, %s40
      %p47 = scmp.eq.s32.totalorder %s14, 1
      %p48 = por %p46, %p47
      %p49 = scmp.ne.s32.totalorder %s40, %s41
      %p50 = scmp.eq.s32.totalorder %s14, 0
      %p51 = por %p49, %p50
      %p52 = scmp.ne.s32.totalorder %s40, %s41
      %p53 = scmp.eq.s32.totalorder %s15, 1
      %p54 = por %p52, %p53
      %p56 = scmp.ne.s32.totalorder %s41, %s55
      %p57 = scmp.eq.s32.totalorder %s15, 0
      %p58 = por %p56, %p57
      %p59 = scmp.le.s32.totalorder 1, %s9
      %p60 = scmp.lt.s32.totalorder %s9, 3
      %p61 = pnand %p59, %p60
      %p62 = pneg %p61
      // Predicated region
      $region9: #{tpu_custom_call.1} parent=5 // pred_check
        _
      $region10: #{tpu_custom_call.1} parent=5 // pred_check_branch
        %64 = sbr.rel (%p61) target = $region12
      $region11: #{tpu_custom_call.1} parent=5 // pred_region
        %s65 = ssub.s32 %s9, 1
        // Predicated region
        $region13: #{tpu_custom_call.1} parent=11 // pred_check
          %p66 = pneg %p30
        $region14: #{tpu_custom_call.1} parent=11 // pred_check_branch
          %68 = sbr.rel (%p66) target = $region16
        $region15: #{tpu_custom_call.1} parent=11 // pred_region
          %s70 = ssub.s32 128, 128
          %71 = vsyncadd [#allocation3], %s70
          %s73 = sshll.u32 [#allocation2], 4
          %s74 = int_to_ptr.vmem [resolvable:$true] %s73
          %76 = dma.hbm_to_vmem [thread:$0]  %s0, 128, %s74, [#allocation3]
        $region16: #{tpu_custom_call.1} parent=11 // pred_fallthru
          _
      $region12: #{tpu_custom_call.1} parent=5 // pred_fallthru
        _
      %p77 = scmp.lt.s32.totalorder %s9, 2
      // Predicated region
      $region17: #{tpu_custom_call.1} parent=5 // pred_check
        %p78 = pneg %p77
      $region18: #{tpu_custom_call.1} parent=5 // pred_check_branch
        %80 = sbr.rel (%p78) target = $region20
      $region19: #{tpu_custom_call.1} parent=5 // pred_region
        _
      $region20: #{tpu_custom_call.1} parent=5 // pred_fallthru
        _
      %p81 = scmp.le.s32.totalorder 1, %s9
      %p82 = scmp.lt.s32.totalorder %s9, 3
      %p83 = pnand %p81, %p82
      %p84 = pneg %p83
      // Predicated region
      $region21: #{tpu_custom_call.1} parent=5 // pred_check
        _
      $region22: #{tpu_custom_call.1} parent=5 // pred_check_branch
        %86 = sbr.rel (%p83) target = $region24
      $region23: #{tpu_custom_call.1} parent=5 // pred_region
        %s87 = ssub.s32 %s9, 1
        // Predicated region
        $region25: #{tpu_custom_call.1} parent=23 // pred_check
          %p88 = pneg %p30
        $region26: #{tpu_custom_call.1} parent=23 // pred_check_branch
          %90 = sbr.rel (%p88) target = $region28
        $region27: #{tpu_custom_call.1} parent=23 // pred_region
          %91 = dma.done [#allocation3], 128
        $region28: #{tpu_custom_call.1} parent=23 // pred_fallthru
          _
        %p92 = pneg %p30
        %p93 = pneg %p27
        %p94 = pneg %p51
        %p95 = pneg %p48
        %v96 = vld [vmem:[#allocation2] sm:$0xff]
        %v97 = vadd.f32 %v96, 1.0
        %98 = vst [vmem:[#allocation5] sm:$0xff] %v97
        // Predicated region
        $region29: #{tpu_custom_call.1} parent=23 // pred_check
          %p99 = pneg %p48
        $region30: #{tpu_custom_call.1} parent=23 // pred_check_branch
          %101 = sbr.rel (%p99) target = $region32
        $region31: #{tpu_custom_call.1} parent=23 // pred_region
          %s103 = ssub.s32 128, 128
          %104 = vsyncadd [#allocation4], %s103
          %s106 = sshll.u32 [#allocation5], 4
          %s107 = int_to_ptr.vmem [resolvable:$true] %s106
          %109 = dma.vmem_to_hbm [thread:$0]  %s107, 128, %s1, [#allocation4]
        $region32: #{tpu_custom_call.1} parent=23 // pred_fallthru
          _
        // Predicated region
        $region33: #{tpu_custom_call.1} parent=23 // pred_check
          %p110 = pneg %p48
        $region34: #{tpu_custom_call.1} parent=23 // pred_check_branch
          %112 = sbr.rel (%p110) target = $region36
        $region35: #{tpu_custom_call.1} parent=23 // pred_region
          %113 = dma.done [#allocation4], 128
        $region36: #{tpu_custom_call.1} parent=23 // pred_fallthru
          _
      $region24: #{tpu_custom_call.1} parent=5 // pred_fallthru
        _
      %p114 = scmp.le.s32.totalorder 2, %s9
      // Predicated region
      $region37: #{tpu_custom_call.1} parent=5 // pred_check
        %p115 = pneg %p114
      $region38: #{tpu_custom_call.1} parent=5 // pred_check_branch
        %117 = sbr.rel (%p115) target = $region40
      $region39: #{tpu_custom_call.1} parent=5 // pred_region
        %s118 = ssub.s32 %s9, 2
      $region40: #{tpu_custom_call.1} parent=5 // pred_fallthru
        _
    $region6: #{tpu_custom_call.1} parent=1 // loop_footer
      %s13 = sadd.s32 1, %s9
    $region7: #{tpu_custom_call.1} parent=1 // loop_footer_branch
      %8 = sbr.rel target = $region3
    $region8: #{tpu_custom_call.1} parent=1 // loop_exit
      _
    %119 = vsyncpa [#allocation3], 1
    %s120 = scalar_lea.sflag [#allocation3], 1
    %121 = vsyncpa %s120, 1
    %122 = vsyncpa [#allocation4], 1
    %s123 = scalar_lea.sflag [#allocation4], 1
    %124 = vsyncpa %s123, 1

// kernel: tpu_custom_call.1
$region0: #{tpu_custom_call.1}
  #allocation0 [shape = 'u32[]', space=smem, size = 0x4, offset = 0x4, fixed_abs, tag = 'smem constant byte address 0x4 - core index']
  #allocation1 [shape = 'u32[144,128]{1,0:T(1,128)}', space=vmem, size = 0x12000, scoped, tag = 'internal scratch']
  %s0 = inlined_call_operand.hbm [shape: f32[16,256], index: 0, kind: input, shape index: {}]
  %s1 = inlined_call_operand.hbm [shape: f32[256,128], index: 1, kind: input, shape index: {}]
  %s2 = inlined_call_operand.vmem [shape: f32[1,128], index: 2, kind: input, shape index: {}]
  %s3 = inlined_call_operand.hbm [shape: f32[16,128], index: 3, kind: input, shape index: {}]
  %s4 = inlined_call_operand.vmem [shape: f32[1,128], index: 4, kind: input, shape index: {}]
  %s5 = inlined_call_operand.vmem [shape: f32[1,128], index: 5, kind: input, shape index: {}]
  %s6 = inlined_call_operand.hbm [shape: f32[16,128], index: 6, kind: output, shape index: {}]
  %s7 = sld [smem:[#allocation0]]
  $region69: #{tpu_custom_call.1} parent=0
    _
  %s9 = ssub.s32 1, %s7
  %s10 = scalar_select 0, %s9, %s7
  $region1: #{tpu_custom_call.1} parent=0
    #allocation2 [shape = 'u8[16384]{0}', space=vmem, size = 0x4000, scoped, tag = 'input window, operand 0']
    #allocation3 [shape = 's32[2]{0}', space=sflag, size = 0x8, scoped, tag = 'scoped memory for tpu_custom_call.1']
    #allocation4 [shape = 's32[2]{0}', space=sflag, size = 0x8, scoped, tag = 'scoped memory for tpu_custom_call.1']
    #allocation5 [shape = 'u8[131072]{0}', space=vmem, size = 0x20000, scoped, tag = 'input window, operand 1, single buffered']
    #allocation6 [shape = 's32[1]{0}', space=sflag, size = 0x4, scoped, tag = 'scoped memory for tpu_custom_call.1']
    #allocation7 [shape = 'u8[8192]{0}', space=vmem, size = 0x2000, scoped, tag = 'input window, operand 3']
    #allocation8 [shape = 'u8[8192]{0}', space=vmem, size = 0x2000, scoped, tag = 'output window, operand 0']
    %11 = vsyncpa [#allocation3], 0
    %s12 = scalar_lea.sflag [#allocation3], 1
    %13 = vsyncpa %s12, 0
    %14 = vsyncpa [#allocation6], 0
    %15 = vsyncpa [#allocation4], 0
    %s16 = scalar_lea.sflag [#allocation4], 1
    %17 = vsyncpa %s16, 0
    loop: start=0, step=1, limit=4
    $region2: #{tpu_custom_call.1} parent=1 // loop_pre_header
      _
    $region3: #{tpu_custom_call.1} parent=1 // loop_header
      %s19 = sphi 0, %s23
      %p20 = scmp.ge.s32.totalorder %s19, 4
      %s29 = sphi 0, %s31
      %s32 = sphi 0, %s29
      %s33 = sphi 0, %s32
      %s49 = sphi 0, %s33
      %s53 = sphi 0, %s53
      %s55 = sphi 0, %s53
      %s56 = sphi 0, %s55
      %s70 = sphi 0, %s56
      %s74 = sphi 0, %s74
      %s76 = sphi 0, %s74
      %s77 = sphi 0, %s76
      %s91 = sphi 0, %s77
      %s97 = sphi 0, %s99
      %s100 = sphi 0, %s97
      %s101 = sphi 0, %s100
      %s117 = sphi 0, %s101
      %s121 = sphi 0, %s121
      %s123 = sphi 0, %s121
      %s124 = sphi 0, %s123
      %s138 = sphi 0, %s124
      %s142 = sphi 0, %s142
      %s144 = sphi 0, %s142
      %s145 = sphi 0, %s144
      %s159 = sphi 0, %s145
      %s165 = sphi 0, %s167
      %s168 = sphi 0, %s165
      %s169 = sphi 0, %s168
      %s185 = sphi 0, %s169
    $region4: #{tpu_custom_call.1} parent=1 // loop_header_branch
      %22 = sbr.rel (%p20) target = $region8
    $region5: #{tpu_custom_call.1} parent=1 // loop_body
      %s24 = ssub.s32 %s19, 1
      %s25 = ssub.s32 %s19, 2
      %s26 = sadd.s32 %s19, 1
      %s27 = ssub.s32 %s19, %s26
      %p28 = scmp.eq.s32.totalorder %s27, 0
      %s30 = sadd.s32 %s29, 1
      %s31 = scalar_select %p28, %s29, %s30
      %p34 = pneg %p28
      %p35 = scmp.eq.s32.totalorder %s19, 1
      %p36 = por %p34, %p35
      %p37 = scmp.ne.s32.totalorder %s29, %s32
      %p38 = scmp.eq.s32.totalorder %s19, 0
      %p39 = por %p37, %p38
      %p40 = scmp.ne.s32.totalorder %s29, %s32
      %p41 = scmp.eq.s32.totalorder %s24, 1
      %p42 = por %p40, %p41
      %p43 = scmp.ne.s32.totalorder %s32, %s33
      %p44 = scmp.eq.s32.totalorder %s24, 0
      %p45 = por %p43, %p44
      %p46 = scmp.ne.s32.totalorder %s32, %s33
      %p47 = scmp.eq.s32.totalorder %s25, 1
      %p48 = por %p46, %p47
      %p50 = scmp.ne.s32.totalorder %s33, %s49
      %p51 = scmp.eq.s32.totalorder %s25, 0
      %p52 = por %p50, %p51
      %s54 = sadd.s32 %s53, 1
      %p57 = scmp.eq.s32.totalorder %s19, 1
      %p58 = scmp.ne.s32.totalorder %s53, %s55
      %p59 = scmp.eq.s32.totalorder %s19, 0
      %p60 = por %p58, %p59
      %p61 = scmp.ne.s32.totalorder %s53, %s55
      %p62 = scmp.eq.s32.totalorder %s24, 1
      %p63 = por %p61, %p62
      %p64 = scmp.ne.s32.totalorder %s55, %s56
      %p65 = scmp.eq.s32.totalorder %s24, 0
      %p66 = por %p64, %p65
      %p67 = scmp.ne.s32.totalorder %s55, %s56
      %p68 = scmp.eq.s32.totalorder %s25, 1
      %p69 = por %p67, %p68
      %p71 = scmp.ne.s32.totalorder %s56, %s70
      %p72 = scmp.eq.s32.totalorder %s25, 0
      %p73 = por %p71, %p72
      %s75 = sadd.s32 %s74, 1
      %p78 = scmp.eq.s32.totalorder %s19, 1
      %p79 = scmp.ne.s32.totalorder %s74, %s76
      %p80 = scmp.eq.s32.totalorder %s19, 0
      %p81 = por %p79, %p80
      %p82 = scmp.ne.s32.totalorder %s74, %s76
      %p83 = scmp.eq.s32.totalorder %s24, 1
      %p84 = por %p82, %p83
      %p85 = scmp.ne.s32.totalorder %s76, %s77
      %p86 = scmp.eq.s32.totalorder %s24, 0
      %p87 = por %p85, %p86
      %p88 = scmp.ne.s32.totalorder %s76, %s77
      %p89 = scmp.eq.s32.totalorder %s25, 1
      %p90 = por %p88, %p89
      %p92 = scmp.ne.s32.totalorder %s77, %s91
      %p93 = scmp.eq.s32.totalorder %s25, 0
      %p94 = por %p92, %p93
      %s95 = ssub.s32 %s19, %s26
      %p96 = scmp.eq.s32.totalorder %s95, 0
      %s98 = sadd.s32 %s97, 1
      %s99 = scalar_select %p96, %s97, %s98
      %p102 = pneg %p96
      %p103 = scmp.eq.s32.totalorder %s19, 1
      %p104 = por %p102, %p103
      %p105 = scmp.ne.s32.totalorder %s97, %s100
      %p106 = scmp.eq.s32.totalorder %s19, 0
      %p107 = por %p105, %p106
      %p108 = scmp.ne.s32.totalorder %s97, %s100
      %p109 = scmp.eq.s32.totalorder %s24, 1
      %p110 = por %p108, %p109
      %p111 = scmp.ne.s32.totalorder %s100, %s101
      %p112 = scmp.eq.s32.totalorder %s24, 0
      %p113 = por %p111, %p112
      %p114 = scmp.ne.s32.totalorder %s100, %s101
      %p115 = scmp.eq.s32.totalorder %s25, 1
      %p116 = por %p114, %p115
      %p118 = scmp.ne.s32.totalorder %s101, %s117
      %p119 = scmp.eq.s32.totalorder %s25, 0
      %p120 = por %p118, %p119
      %s122 = sadd.s32 %s121, 1
      %p125 = scmp.eq.s32.totalorder %s19, 1
      %p126 = scmp.ne.s32.totalorder %s121, %s123
      %p127 = scmp.eq.s32.totalorder %s19, 0
      %p128 = por %p126, %p127
      %p129 = scmp.ne.s32.totalorder %s121, %s123
      %p130 = scmp.eq.s32.totalorder %s24, 1
      %p131 = por %p129, %p130
      %p132 = scmp.ne.s32.totalorder %s123, %s124
      %p133 = scmp.eq.s32.totalorder %s24, 0
      %p134 = por %p132, %p133
      %p135 = scmp.ne.s32.totalorder %s123, %s124
      %p136 = scmp.eq.s32.totalorder %s25, 1
      %p137 = por %p135, %p136
      %p139 = scmp.ne.s32.totalorder %s124, %s138
      %p140 = scmp.eq.s32.totalorder %s25, 0
      %p141 = por %p139, %p140
      %s143 = sadd.s32 %s142, 1
      %p146 = scmp.eq.s32.totalorder %s19, 1
      %p147 = scmp.ne.s32.totalorder %s142, %s144
      %p148 = scmp.eq.s32.totalorder %s19, 0
      %p149 = por %p147, %p148
      %p150 = scmp.ne.s32.totalorder %s142, %s144
      %p151 = scmp.eq.s32.totalorder %s24, 1
      %p152 = por %p150, %p151
      %p153 = scmp.ne.s32.totalorder %s144, %s145
      %p154 = scmp.eq.s32.totalorder %s24, 0
      %p155 = por %p153, %p154
      %p156 = scmp.ne.s32.totalorder %s144, %s145
      %p157 = scmp.eq.s32.totalorder %s25, 1
      %p158 = por %p156, %p157
      %p160 = scmp.ne.s32.totalorder %s145, %s159
      %p161 = scmp.eq.s32.totalorder %s25, 0
      %p162 = por %p160, %p161
      %s163 = ssub.s32 %s19, %s26
      %p164 = scmp.eq.s32.totalorder %s163, 0
      %s166 = sadd.s32 %s165, 1
      %s167 = scalar_select %p164, %s165, %s166
      %p170 = pneg %p164
      %p171 = scmp.eq.s32.totalorder %s19, 1
      %p172 = por %p170, %p171
      %p173 = scmp.ne.s32.totalorder %s165, %s168
      %p174 = scmp.eq.s32.totalorder %s19, 0
      %p175 = por %p173, %p174
      %p176 = scmp.ne.s32.totalorder %s165, %s168
      %p177 = scmp.eq.s32.totalorder %s24, 1
      %p178 = por %p176, %p177
      %p179 = scmp.ne.s32.totalorder %s168, %s169
      %p180 = scmp.eq.s32.totalorder %s24, 0
      %p181 = por %p179, %p180
      %p182 = scmp.ne.s32.totalorder %s168, %s169
      %p183 = scmp.eq.s32.totalorder %s25, 1
      %p184 = por %p182, %p183
      %p186 = scmp.ne.s32.totalorder %s169, %s185
      %p187 = scmp.eq.s32.totalorder %s25, 0
      %p188 = por %p186, %p187
      %p189 = scmp.le.s32.totalorder 1, %s19
      %p190 = scmp.lt.s32.totalorder %s19, 3
      %p191 = pnand %p189, %p190
      %p192 = pneg %p191
      // Predicated region
      $region9: #{tpu_custom_call.1} parent=5 // pred_check
        _
      $region10: #{tpu_custom_call.1} parent=5 // pred_check_branch
        %194 = sbr.rel (%p191) target = $region12
      $region11: #{tpu_custom_call.1} parent=5 // pred_region
        %s195 = ssub.s32 %s19, 1
        // Predicated region
        $region13: #{tpu_custom_call.1} parent=11 // pred_check
          %p196 = pneg %p66
        $region14: #{tpu_custom_call.1} parent=11 // pred_check_branch
          %198 = sbr.rel (%p196) target = $region16
        $region15: #{tpu_custom_call.1} parent=11 // pred_region
          %s200 = ssub.s32 4096, 4096
          %201 = vsyncadd [#allocation6], %s200
          %s202 = sshll.u32 [#allocation5], 4
          %s203 = int_to_ptr.vmem [resolvable:$true] %s202
          %208 = dma.hbm_to_vmem [thread:$0]  %s1, 4096, %s203, [#allocation6], 128, 128, 8
        $region16: #{tpu_custom_call.1} parent=11 // pred_fallthru
          _
        // Predicated region
        $region17: #{tpu_custom_call.1} parent=11 // pred_check
          %p209 = pneg %p87
        $region18: #{tpu_custom_call.1} parent=11 // pred_check_branch
          %211 = sbr.rel (%p209) target = $region20
        $region19: #{tpu_custom_call.1} parent=11 // pred_region
          _
        $region20: #{tpu_custom_call.1} parent=11 // pred_fallthru
          _
        // Predicated region
        $region21: #{tpu_custom_call.1} parent=11 // pred_check
          %p212 = pneg %p134
        $region22: #{tpu_custom_call.1} parent=11 // pred_check_branch
          %214 = sbr.rel (%p212) target = $region24
        $region23: #{tpu_custom_call.1} parent=11 // pred_region
          _
        $region24: #{tpu_custom_call.1} parent=11 // pred_fallthru
          _
        // Predicated region
        $region25: #{tpu_custom_call.1} parent=11 // pred_check
          %p215 = pneg %p155
        $region26: #{tpu_custom_call.1} parent=11 // pred_check_branch
          %217 = sbr.rel (%p215) target = $region28
        $region27: #{tpu_custom_call.1} parent=11 // pred_region
          _
        $region28: #{tpu_custom_call.1} parent=11 // pred_fallthru
          _
      $region12: #{tpu_custom_call.1} parent=5 // pred_fallthru
        _
      %p218 = scmp.lt.s32.totalorder %s19, 2
      // Predicated region
      $region29: #{tpu_custom_call.1} parent=5 // pred_check
        %p219 = pneg %p218
      $region30: #{tpu_custom_call.1} parent=5 // pred_check_branch
        %221 = sbr.rel (%p219) target = $region32
      $region31: #{tpu_custom_call.1} parent=5 // pred_region
        // Predicated region
        $region33: #{tpu_custom_call.1} parent=31 // pred_check
          %p222 = pneg %p39
        $region34: #{tpu_custom_call.1} parent=31 // pred_check_branch
          %224 = sbr.rel (%p222) target = $region36
        $region35: #{tpu_custom_call.1} parent=31 // pred_region
          %s225 = sand.u32 %s19, 1
          %s226 = scalar_lea.sflag [#allocation3], %s225
          %s227 = sand.u32 %s29, 1
          %s228 = smul.addr %s227, 16
          %s229 = scalar_lea.vmem [#allocation2], %s228
          %s231 = ssub.s32 256, 256
          %232 = vsyncadd %s226, %s231
          %s233 = smul.addr %s19, 2
          %s234 = smul.addr %s233, 128
          %s235 = scalar_lea.hbm %s0, %s234
          %s237 = sshll.u32 %s229, 4
          %s238 = int_to_ptr.vmem [resolvable:$true] %s237
          %240 = dma.hbm_to_vmem [thread:$0]  %s235, 256, %s238, %s226
        $region36: #{tpu_custom_call.1} parent=31 // pred_fallthru
          _
        // Predicated region
        $region37: #{tpu_custom_call.1} parent=31 // pred_check
          %p241 = pneg %p107
        $region38: #{tpu_custom_call.1} parent=31 // pred_check_branch
          %243 = sbr.rel (%p241) target = $region40
        $region39: #{tpu_custom_call.1} parent=31 // pred_region
          %s244 = sand.u32 %s19, 1
          %s245 = scalar_lea.sflag [#allocation3], %s244
          %s246 = sand.u32 %s97, 1
          %s247 = smul.addr %s246, 8
          %s248 = scalar_lea.vmem [#allocation7], %s247
          %s250 = ssub.s32 128, 128
          %251 = vsyncadd %s245, %s250
          %s252 = smul.addr %s19, 128
          %s253 = scalar_lea.hbm %s3, %s252
          %s255 = sshll.u32 %s248, 4
          %s256 = int_to_ptr.vmem [resolvable:$true] %s255
          %258 = dma.hbm_to_vmem [thread:$0]  %s253, 128, %s256, %s245
        $region40: #{tpu_custom_call.1} parent=31 // pred_fallthru
          _
      $region32: #{tpu_custom_call.1} parent=5 // pred_fallthru
        _
      %p259 = scmp.le.s32.totalorder 1, %s19
      %p260 = scmp.lt.s32.totalorder %s19, 3
      %p261 = pnand %p259, %p260
      %p262 = pneg %p261
      // Predicated region
      $region41: #{tpu_custom_call.1} parent=5 // pred_check
        _
      $region42: #{tpu_custom_call.1} parent=5 // pred_check_branch
        %264 = sbr.rel (%p261) target = $region44
      $region43: #{tpu_custom_call.1} parent=5 // pred_region
        %s265 = ssub.s32 %s19, 1
        %s266 = sand.u32 %s24, 1
        %s267 = scalar_lea.sflag [#allocation3], %s266
        %s268 = sand.u32 %s32, 1
        %s269 = smul.addr %s268, 16
        %s270 = scalar_lea.vmem [#allocation2], %s269
        // Predicated region
        $region45: #{tpu_custom_call.1} parent=43 // pred_check
          %p271 = pneg %p45
        $region46: #{tpu_custom_call.1} parent=43 // pred_check_branch
          %273 = sbr.rel (%p271) target = $region48
        $region47: #{tpu_custom_call.1} parent=43 // pred_region
          %274 = dma.done %s267, 256
        $region48: #{tpu_custom_call.1} parent=43 // pred_fallthru
          _
        // Predicated region
        $region49: #{tpu_custom_call.1} parent=43 // pred_check
          %p275 = pneg %p66
        $region50: #{tpu_custom_call.1} parent=43 // pred_check_branch
          %277 = sbr.rel (%p275) target = $region52
        $region51: #{tpu_custom_call.1} parent=43 // pred_region
          %278 = dma.done [#allocation6], 4096
        $region52: #{tpu_custom_call.1} parent=43 // pred_fallthru
          _
        %s279 = sand.u32 %s24, 1
        %s280 = scalar_lea.sflag [#allocation3], %s279
        %s281 = sand.u32 %s100, 1
        %s282 = smul.addr %s281, 8
        %s283 = scalar_lea.vmem [#allocation7], %s282
        // Predicated region
        $region53: #{tpu_custom_call.1} parent=43 // pred_check
          %p284 = pneg %p113
        $region54: #{tpu_custom_call.1} parent=43 // pred_check_branch
          %286 = sbr.rel (%p284) target = $region56
        $region55: #{tpu_custom_call.1} parent=43 // pred_region
          %287 = dma.done %s280, 128
        $region56: #{tpu_custom_call.1} parent=43 // pred_fallthru
          _
        %s288 = sand.u32 %s24, 1
        %s289 = scalar_lea.sflag [#allocation3], %s288
        %s290 = sand.u32 %s32, 1
        %s291 = smul.addr %s290, 16
        %s292 = scalar_lea.vmem [#allocation2], %s291
        %p293 = pneg %p45
        %p294 = pneg %p42
        %p295 = pneg %p66
        %p296 = pneg %p63
        %p297 = pneg %p87
        %p298 = pneg %p84
        %s299 = sand.u32 %s24, 1
        %s300 = scalar_lea.sflag [#allocation3], %s299
        %s301 = sand.u32 %s100, 1
        %s302 = smul.addr %s301, 8
        %s303 = scalar_lea.vmem [#allocation7], %s302
        %p304 = pneg %p113
        %p305 = pneg %p110
        %p306 = pneg %p134
        %p307 = pneg %p131
        %p308 = pneg %p155
        %p309 = pneg %p152
        %p310 = pneg %p181
        %p311 = pneg %p178
        %s312 = sand.u32 %s168, 1
        %s313 = scalar_lea.sflag [#allocation4], %s312
        %s314 = sand.u32 %s168, 1
        %s315 = smul.addr %s314, 8
        %s316 = scalar_lea.vmem [#allocation8], %s315
        %v317 = vld [vmem:[%s270] sm:$0xff]
        %v318 = vld [vmem:[%s270 + $0x8] sm:$0xff]
        %v319 = vld [vmem:[#allocation5] sm:$0xff]
        %v320 = vld [vmem:[#allocation5 + $0x8] sm:$0xff]
        %v321 = vld [vmem:[#allocation5 + $0x10] sm:$0xff]
        %v322 = vld [vmem:[#allocation5 + $0x18] sm:$0xff]
        %v323 = vld [vmem:[#allocation5 + $0x20] sm:$0xff]
        %v324 = vld [vmem:[#allocation5 + $0x28] sm:$0xff]
        %v325 = vld [vmem:[#allocation5 + $0x30] sm:$0xff]
        %v326 = vld [vmem:[#allocation5 + $0x38] sm:$0xff]
        %v327 = vld [vmem:[#allocation5 + $0x40] sm:$0xff]
        %v328 = vld [vmem:[#allocation5 + $0x48] sm:$0xff]
        %v329 = vld [vmem:[#allocation5 + $0x50] sm:$0xff]
        %v330 = vld [vmem:[#allocation5 + $0x58] sm:$0xff]
        %v331 = vld [vmem:[#allocation5 + $0x60] sm:$0xff]
        %v332 = vld [vmem:[#allocation5 + $0x68] sm:$0xff]
        %v333 = vld [vmem:[#allocation5 + $0x70] sm:$0xff]
        %v334 = vld [vmem:[#allocation5 + $0x78] sm:$0xff]
        %v335 = vld [vmem:[#allocation5 + $0x80] sm:$0xff]
        %v336 = vld [vmem:[#allocation5 + $0x88] sm:$0xff]
        %v337 = vld [vmem:[#allocation5 + $0x90] sm:$0xff]
        %v338 = vld [vmem:[#allocation5 + $0x98] sm:$0xff]
        %v339 = vld [vmem:[#allocation5 + $0xa0] sm:$0xff]
        %v340 = vld [vmem:[#allocation5 + $0xa8] sm:$0xff]
        %v341 = vld [vmem:[#allocation5 + $0xb0] sm:$0xff]
        %v342 = vld [vmem:[#allocation5 + $0xb8] sm:$0xff]
        %v343 = vld [vmem:[#allocation5 + $0xc0] sm:$0xff]
        %v344 = vld [vmem:[#allocation5 + $0xc8] sm:$0xff]
        %v345 = vld [vmem:[#allocation5 + $0xd0] sm:$0xff]
        %v346 = vld [vmem:[#allocation5 + $0xd8] sm:$0xff]
        %v347 = vld [vmem:[#allocation5 + $0xe0] sm:$0xff]
        %v348 = vld [vmem:[#allocation5 + $0xe8] sm:$0xff]
        %v349 = vld [vmem:[#allocation5 + $0xf0] sm:$0xff]
        %v350 = vld [vmem:[#allocation5 + $0xf8] sm:$0xff]
        %v351 = vld [vmem:[%s2] sm:$0x1]
        %v353 = vlaneseq
        %v354 = vshrl.u32 %v353, 7
        %v355 = vsub.s32 0, %v354
        %v356 = vrot.slane %v351, %v355
        %358 = vmatprep.subr.mxu0 0.0
        %359 = vmatpush1.msra.mxu0 %v319
        %360 = vmatprep.subr.mxu0 0.0
        %361 = vmatpush1.msra.mxu0 %v320
        %362 = vmatprep.subr.mxu0 0.0
        %363 = vmatpush1.msra.mxu0 %v321
        %364 = vmatprep.subr.mxu0 0.0
        %365 = vmatpush1.msra.mxu0 %v322
        %366 = vmatprep.subr.mxu0 0.0
        %367 = vmatpush1.msra.mxu0 %v323
        %368 = vmatprep.subr.mxu0 0.0
        %369 = vmatpush1.msra.mxu0 %v324
        %370 = vmatprep.subr.mxu0 0.0
        %371 = vmatpush1.msra.mxu0 %v325
        %372 = vmatprep.subr.mxu0 0.0
        %373 = vmatpush1.msra.mxu0 %v326
        %374 = vmatprep.subr.mxu0 0.0
        %375 = vmatpush1.msra.mxu0 %v327
        %376 = vmatprep.subr.mxu0 0.0
        %377 = vmatpush1.msra.mxu0 %v328
        %378 = vmatprep.subr.mxu0 0.0
        %379 = vmatpush1.msra.mxu0 %v329
        %380 = vmatprep.subr.mxu0 0.0
        %381 = vmatpush1.msra.mxu0 %v330
        %382 = vmatprep.subr.mxu0 0.0
        %383 = vmatpush1.msra.mxu0 %v331
        %384 = vmatprep.subr.mxu0 0.0
        %385 = vmatpush1.msra.mxu0 %v332
        %386 = vmatprep.subr.mxu0 0.0
        %387 = vmatpush1.msra.mxu0 %v333
        %388 = vmatprep.subr.mxu0 0.0
        %389 = vmatpush1.msra.mxu0 %v334
        %390 = vmatprep.subr.mxu0 0.0
        %391 = vmatpush1.msra.mxu0 %v335
        %392 = vmatprep.subr.mxu0 0.0
        %393 = vmatpush1.msra.mxu0 %v336
        %394 = vmatprep.subr.mxu0 0.0
        %395 = vmatpush1.msra.mxu0 %v337
        %396 = vmatprep.subr.mxu0 0.0
        %397 = vmatpush1.msra.mxu0 %v338
        %398 = vmatprep.subr.mxu0 0.0
        %399 = vmatpush1.msra.mxu0 %v339
        %400 = vmatprep.subr.mxu0 0.0
        %401 = vmatpush1.msra.mxu0 %v340
        %402 = vmatprep.subr.mxu0 0.0
        %403 = vmatpush1.msra.mxu0 %v341
        %404 = vmatprep.subr.mxu0 0.0
        %405 = vmatpush1.msra.mxu0 %v342
        %406 = vmatprep.subr.mxu0 0.0
        %407 = vmatpush1.msra.mxu0 %v343
        %408 = vmatprep.subr.mxu0 0.0
        %409 = vmatpush1.msra.mxu0 %v344
        %410 = vmatprep.subr.mxu0 0.0
        %411 = vmatpush1.msra.mxu0 %v345
        %412 = vmatprep.subr.mxu0 0.0
        %413 = vmatpush1.msra.mxu0 %v346
        %414 = vmatprep.subr.mxu0 0.0
        %415 = vmatpush1.msra.mxu0 %v347
        %416 = vmatprep.subr.mxu0 0.0
        %417 = vmatpush1.msra.mxu0 %v348
        %418 = vmatprep.subr.mxu0 0.0
        %419 = vmatpush1.msra.mxu0 %v349
        %420 = vmatprep.subr.mxu0 0.0
        %421 = vmatpush1.msra.mxu0 %v350
        %422 = vmatprep.mubr.f32.mxu0 %v318
        %423 = vmatmul.mubr.f32.gmra.mrb[0].mxu0 %v317
        %v424 = vpop.f32.mrb[0].mxu0
        %v425 = vadd.f32 %v356, %v424
        %v426 = vpop.f32.mrb[0].mxu0
        %427 = vdwg.mxu0
        %v428 = vld [vmem:[%s283] sm:$0xff]
        %v429 = vadd.f32 %v425, %v428
        %430 = vadd.xlane.f32.xlu0 %v429
        %v431 = vpop.xlane.xlu0 %430
        %v432 = vrcp.pop 128.0
        %v433 = vmul.f32 %v431, %v432
        %v434 = vmul.f32 %v429, %v429
        %435 = vadd.xlane.f32.xlu0 %v434
        %v436 = vpop.xlane.xlu0 %435
        %v437 = vmul.f32 %v436, %v432
        %v438 = vmul.f32 %v433, %v433
        %v439 = vsub.f32 %v437, %v438
        %v440 = vmax.f32 %v439, 0.0
        %v441 = vsub.f32 %v429, %v433
        %v442 = vadd.f32 %v440, 1e-06
        %v443 = vrsqrt.pop %v442
        %v444 = vmul.f32 %v441, %v443
        %v445 = vld [vmem:[%s4] sm:$0x1]
        %v447 = vlaneseq
        %v448 = vshrl.u32 %v447, 7
        %v449 = vsub.s32 0, %v448
        %v450 = vrot.slane %v445, %v449
        %v452 = vmul.f32 %v444, %v450
        %v453 = vld [vmem:[%s5] sm:$0x1]
        %v455 = vlaneseq
        %v456 = vshrl.u32 %v455, 7
        %v457 = vsub.s32 0, %v456
        %v458 = vrot.slane %v453, %v457
        %v460 = vadd.f32 %v452, %v458
        %461 = vst [vmem:[%s316] sm:$0xff] %v460
        %s462 = sand.u32 %s168, 1
        %s463 = scalar_lea.sflag [#allocation4], %s462
        %s464 = sand.u32 %s168, 1
        %s465 = smul.addr %s464, 8
        %s466 = scalar_lea.vmem [#allocation8], %s465
        // Predicated region
        $region57: #{tpu_custom_call.1} parent=43 // pred_check
          %p467 = pneg %p178
        $region58: #{tpu_custom_call.1} parent=43 // pred_check_branch
          %469 = sbr.rel (%p467) target = $region60
        $region59: #{tpu_custom_call.1} parent=43 // pred_region
          %s471 = ssub.s32 128, 128
          %472 = vsyncadd %s463, %s471
          %s473 = smul.addr %s24, 128
          %s474 = scalar_lea.hbm %s6, %s473
          %s476 = sshll.u32 %s466, 4
          %s477 = int_to_ptr.vmem [resolvable:$true] %s476
          %479 = dma.vmem_to_hbm [thread:$0]  %s477, 128, %s474, %s463
        $region60: #{tpu_custom_call.1} parent=43 // pred_fallthru
          _
      $region44: #{tpu_custom_call.1} parent=5 // pred_fallthru
        _
      %p480 = scmp.le.s32.totalorder 2, %s19
      // Predicated region
      $region61: #{tpu_custom_call.1} parent=5 // pred_check
        %p481 = pneg %p480
      $region62: #{tpu_custom_call.1} parent=5 // pred_check_branch
        %483 = sbr.rel (%p481) target = $region64
      $region63: #{tpu_custom_call.1} parent=5 // pred_region
        %s484 = ssub.s32 %s19, 2
        // Predicated region
        $region65: #{tpu_custom_call.1} parent=63 // pred_check
          %p485 = pneg %p184
        $region66: #{tpu_custom_call.1} parent=63 // pred_check_branch
          %487 = sbr.rel (%p485) target = $region68
        $region67: #{tpu_custom_call.1} parent=63 // pred_region
          %s488 = sand.u32 %s169, 1
          %s489 = scalar_lea.sflag [#allocation4], %s488
          %s490 = sand.u32 %s169, 1
          %s491 = smul.addr %s490, 8
          %s492 = scalar_lea.vmem [#allocation8], %s491
          %493 = dma.done %s489, 128
        $region68: #{tpu_custom_call.1} parent=63 // pred_fallthru
          _
      $region64: #{tpu_custom_call.1} parent=5 // pred_fallthru
        _
    $region6: #{tpu_custom_call.1} parent=1 // loop_footer
      %s23 = sadd.s32 1, %s19
    $region7: #{tpu_custom_call.1} parent=1 // loop_footer_branch
      %18 = sbr.rel target = $region3
    $region8: #{tpu_custom_call.1} parent=1 // loop_exit
      _
    %494 = vsyncpa [#allocation3], 1
    %s495 = scalar_lea.sflag [#allocation3], 1
    %496 = vsyncpa %s495, 1
    %497 = vsyncpa [#allocation6], 1
    %498 = vsyncpa [#allocation4], 1
    %s499 = scalar_lea.sflag [#allocation4], 1
    %500 = vsyncpa %s499, 1

</llo_original>
